<compile_context>
chip_gen: v7x
topology: tpu7x:2x2x1
jax: 0.10.0
libtpu: 0.0.40
codegen_flags: <defaults>
</compile_context>

<pallas_src>
import functools

import jax
import jax.numpy as jnp
from jax.experimental import pallas as pl
from jax.experimental.pallas import tpu as pltpu


def _sublane_multiple(itemsize):
    # Sub-32-bit dtypes pack along sublanes: 8 rows f32, 16 bf16, 32 int8/fp8.
    return max(1, 32 // int(itemsize))


def _target_block_bytes():
    # ~2 MiB per buffer on older / low-BW parts (v5e: 16 MiB scoped-VMEM
    # default), ~4 MiB on v6e/v7x (32 MiB scoped default, higher HBM BW).
    try:
        kind = jax.devices()[0].device_kind.lower()
    except Exception:
        return 2 * 1024 * 1024
    if any(v in kind for v in ("v2", "v3", "v4", "v5")):
        return 2 * 1024 * 1024
    return 4 * 1024 * 1024


def _choose_block(rows, cols, itemsize, target_bytes):
    """Pick a lane+sublane-dense block (row_tile, col_tile) of ~target_bytes."""
    sub = _sublane_multiple(itemsize)
    target_elems = max(1, target_bytes // itemsize)

    if rows * cols <= target_elems:
        return rows, cols                       # whole array; full extents are legal

    if cols <= target_elems // sub:
        # Full width fits the budget with at least one sublane-multiple of rows.
        col_tile = cols
        row_tile = ((target_elems // cols) // sub) * sub       # >= sub, < rows
    else:
        # Width alone exceeds the budget: minimal dense row tile, tile lanes.
        row_tile = rows if rows <= sub else sub
        col_tile = max(128, ((target_elems // row_tile) // 128) * 128)
        col_tile = min(col_tile, cols)          # either == cols or a 128-multiple
    return row_tile, col_tile


def _unnormalize_kernel(x_ref, scale_ref, shift_ref, o_ref, *, row_tile):
    # x_ref/o_ref: (row_tile, col_tile) tile of the flattened (N*C, H*W) image.
    # scale_ref/shift_ref: full (rows_padded, 1) f32 arrays, VMEM-resident
    # (constant index_map => fetched once), sliced per row block here.
    if scale_ref.shape[0] == row_tile:          # single row block: use it whole
        scale = scale_ref[...]
        shift = shift_ref[...]
    else:
        r0 = pl.multiple_of(pl.program_id(0) * row_tile, row_tile)
        scale = scale_ref[pl.ds(r0, row_tile), :]
        shift = shift_ref[pl.ds(r0, row_tile), :]
    x = x_ref[...].astype(jnp.float32)
    o_ref[...] = (x * scale + shift).astype(o_ref.dtype)


def unnormalize(x, mean, std, *, min_pallas_bytes=4 * 1024 * 1024):
    """x: [N, C, H, W]; mean/std: [C]. Returns x * std[c] + mean[c] per channel."""
    N, C, H, W = x.shape
    assert C == mean.shape[0] == std.shape[0]

    itemsize = jnp.dtype(x.dtype).itemsize
    rows, cols = N * C, H * W

    # Tiny inputs: a fused XLA elementwise op beats fixed Pallas launch overhead.
    if rows * cols * itemsize < min_pallas_bytes:
        s = std.reshape(1, C, 1, 1).astype(x.dtype)
        m = mean.reshape(1, C, 1, 1).astype(x.dtype)
        return x * s + m

    x2 = x.reshape(rows, cols)

    target_bytes = _target_block_bytes()
    row_tile, col_tile = _choose_block(rows, cols, itemsize, target_bytes)
    sub = _sublane_multiple(itemsize)

    n_row = pl.cdiv(rows, row_tile)
    n_col = pl.cdiv(cols, col_tile)

    # v7x 2-TC balance: with a single column block, avoid a small odd number of
    # row blocks (one core would otherwise idle for a whole block's worth).
    if n_col == 1 and 1 < n_row < 16 and n_row % 2 == 1 and row_tile < rows:
        cand = (pl.cdiv(rows, n_row + 1) // sub) * sub
        if sub <= cand < rows:
            row_tile = cand
            n_row = pl.cdiv(rows, row_tile)

    grid = (n_row, n_col)

    # Per-row (per (n, c) slab) constants, f32 for accuracy, padded so the
    # in-kernel slice of the last row block never reads out of bounds.
    rows_padded = n_row * row_tile
    scale = jnp.tile(std.astype(jnp.float32), N).reshape(rows, 1)
    shift = jnp.tile(mean.astype(jnp.float32), N).reshape(rows, 1)
    if rows_padded != rows:
        pad = ((0, rows_padded - rows), (0, 0))
        scale = jnp.pad(scale, pad)
        shift = jnp.pad(shift, pad)

    kernel = functools.partial(_unnormalize_kernel, row_tile=row_tile)

    out = pl.pallas_call(
        kernel,
        out_shape=jax.ShapeDtypeStruct((rows, cols), x.dtype),
        grid=grid,
        in_specs=[
            pl.BlockSpec((row_tile, col_tile), lambda i, j: (i, j)),
            pl.BlockSpec((rows_padded, 1), lambda i, j: (0, 0)),   # VMEM-resident
            pl.BlockSpec((rows_padded, 1), lambda i, j: (0, 0)),   # VMEM-resident
        ],
        out_specs=pl.BlockSpec((row_tile, col_tile), lambda i, j: (i, j)),
        compiler_params=pltpu.CompilerParams(
            dimension_semantics=("parallel", "parallel"),
            vmem_limit_bytes=32 * 1024 * 1024,
        ),
        cost_estimate=pl.CostEstimate(
            flops=2 * rows * cols,
            transcendentals=0,
            bytes_accessed=2 * rows * cols * itemsize + 2 * rows_padded * 4,
        ),
    )(x2, scale, shift)

    return out.reshape(N, C, H, W)


if __name__ == "__main__":
    key = jax.random.PRNGKey(0)
    N, C, H, W = 2, 3, 16, 16  # module hardcodes 3 channels
    x = jax.random.normal(key, (N, C, H, W), dtype=jnp.float32)

    # Deterministic per-channel parameters (ImageNet-style constants).
    mean = jnp.array([0.485, 0.456, 0.406], dtype=jnp.float32)
    std = jnp.array([0.229, 0.224, 0.225], dtype=jnp.float32)

    # Force the Pallas path (the auto path would take the tiny-input fallback).
    out = unnormalize(x, mean, std, min_pallas_bytes=0)
    out = jax.block_until_ready(out)

    # Reference check (plain JAX, mirrors the PyTorch forward exactly).
    ref = x * std.reshape(1, 3, 1, 1) + mean.reshape(1, 3, 1, 1)
    assert out.shape == ref.shape
    assert out.dtype == ref.dtype
    assert jnp.allclose(out, ref, atol=1e-6, rtol=1e-6)

    # Auto path (tiny-input XLA fallback) must match as well.
    out2 = jax.block_until_ready(unnormalize(x, mean, std))
    assert jnp.allclose(out2, ref, atol=1e-6, rtol=1e-6)

    print("KERNEL_OK")
</pallas_src>

<mosaic_0001>
module attributes {stable_mosaic.version = 11 : i64} {
  func.func @_unnormalize_kernel(%arg0: i32, %arg1: i32, %arg2: memref<6x256xf32, #tpu.memory_space<vmem>>, %arg3: memref<6x1xf32, #tpu.memory_space<vmem>>, %arg4: memref<6x1xf32, #tpu.memory_space<vmem>>, %arg5: memref<6x256xf32, #tpu.memory_space<vmem>>) attributes {dimension_semantics = [#tpu.dimension_semantics<parallel>, #tpu.dimension_semantics<parallel>], iteration_bounds = array<i64: 1, 1>, scalar_prefetch = 0 : i64, scratch_operands = 0 : i64, tpu.core_type = #tpu.core_type<tc>, window_params = [{transform_indices = @transform_0, window_bounds = array<i64: 6, 256>}, {pipeline_mode = #tpu.pipeline_mode<synchronous>, transform_indices = @transform_1, window_bounds = array<i64: 6, 1>}, {pipeline_mode = #tpu.pipeline_mode<synchronous>, transform_indices = @transform_2, window_bounds = array<i64: 6, 1>}, {transform_indices = @transform_3, window_bounds = array<i64: 6, 256>}]} {
    %c0 = arith.constant 0 : index
    %c0_0 = arith.constant 0 : index
    %0 = vector.load %arg3[%c0, %c0_0] : memref<6x1xf32, #tpu.memory_space<vmem>>, vector<6x1xf32>
    %c0_1 = arith.constant 0 : index
    %c0_2 = arith.constant 0 : index
    %1 = vector.load %arg4[%c0_1, %c0_2] : memref<6x1xf32, #tpu.memory_space<vmem>>, vector<6x1xf32>
    %c0_3 = arith.constant 0 : index
    %c0_4 = arith.constant 0 : index
    %2 = vector.load %arg2[%c0_3, %c0_4] : memref<6x256xf32, #tpu.memory_space<vmem>>, vector<6x256xf32>
    %3 = vector.broadcast %0 : vector<6x1xf32> to vector<6x256xf32>
    %4 = arith.mulf %2, %3 : vector<6x256xf32>
    %5 = vector.broadcast %1 : vector<6x1xf32> to vector<6x256xf32>
    %6 = arith.addf %4, %5 : vector<6x256xf32>
    %c0_5 = arith.constant 0 : index
    %c0_6 = arith.constant 0 : index
    %7 = vector.load %arg5[%c0_5, %c0_6] : memref<6x256xf32, #tpu.memory_space<vmem>>, vector<6x256xf32>
    tpu.vector_store %arg5[%c0_5, %c0_6], %6 {strides = array<i32>} : memref<6x256xf32, #tpu.memory_space<vmem>>, vector<6x256xf32>,
    return
  }
  func.func @transform_0(%arg0: i32, %arg1: i32) -> (i32, i32) {
    %c0_i32 = arith.constant 0 : i32
    return %arg0, %arg1 : i32, i32
  }
  func.func @transform_1(%arg0: i32, %arg1: i32) -> (i32, i32) {
    %c0_i32 = arith.constant 0 : i32
    %c0_i32_0 = arith.constant 0 : i32
    %c0_i32_1 = arith.constant 0 : i32
    return %c0_i32, %c0_i32_0 : i32, i32
  }
  func.func @transform_2(%arg0: i32, %arg1: i32) -> (i32, i32) {
    %c0_i32 = arith.constant 0 : i32
    %c0_i32_0 = arith.constant 0 : i32
    %c0_i32_1 = arith.constant 0 : i32
    return %c0_i32, %c0_i32_0 : i32, i32
  }
  func.func @transform_3(%arg0: i32, %arg1: i32) -> (i32, i32) {
    %c0_i32 = arith.constant 0 : i32
    return %arg0, %arg1 : i32, i32
  }
}

</mosaic_0001>

<llo_original>
// kernel: tpu_custom_call.1
$region0: #{tpu_custom_call.1}
  #allocation0 [shape = 'u32[]', space=smem, size = 0x4, offset = 0x4, fixed_abs, tag = 'smem constant byte address 0x4 - core index']
  #allocation1 [shape = 'u32[144,128]{1,0:T(1,128)}', space=vmem, size = 0x12000, scoped, tag = 'internal scratch']
  %s0 = inlined_call_operand.vmem [shape: f32[6,256], index: 0, kind: input, shape index: {}]
  %s1 = inlined_call_operand.vmem [shape: f32[6,1], index: 1, kind: input, shape index: {}]
  %s2 = inlined_call_operand.vmem [shape: f32[6,1], index: 2, kind: input, shape index: {}]
  %s3 = inlined_call_operand.hbm [shape: f32[6,256], index: 3, kind: output, shape index: {}]
  %s4 = sld [smem:[#allocation0]]
  $region22: #{tpu_custom_call.1} parent=0
    _
  %s6 = ssub.s32 1, %s4
  %s7 = scalar_select 0, %s6, %s4
  $region1: #{tpu_custom_call.1} parent=0
    #allocation2 [shape = 'u8[8192]{0}', space=vmem, size = 0x2000, scoped, tag = 'output window, operand 0, single buffered']
    #allocation3 [shape = 's32[1]{0}', space=sflag, size = 0x4, scoped, tag = 'scoped memory for tpu_custom_call.1']
    %8 = vsyncpa [#allocation3], 0
    // Predicated region
    $region2: #{tpu_custom_call.1} parent=1 // pred_check
      _
    $region3: #{tpu_custom_call.1} parent=1 // pred_check_branch
      %10 = sbr.rel (0) target = $region5
    $region4: #{tpu_custom_call.1} parent=1 // pred_region
      _
    $region5: #{tpu_custom_call.1} parent=1 // pred_fallthru
      _
    // Predicated region
    $region6: #{tpu_custom_call.1} parent=1 // pred_check
      _
    $region7: #{tpu_custom_call.1} parent=1 // pred_check_branch
      %12 = sbr.rel (0) target = $region9
    $region8: #{tpu_custom_call.1} parent=1 // pred_region
      _
    $region9: #{tpu_custom_call.1} parent=1 // pred_fallthru
      _
    // Predicated region
    $region10: #{tpu_custom_call.1} parent=1 // pred_check
      _
    $region11: #{tpu_custom_call.1} parent=1 // pred_check_branch
      %14 = sbr.rel (0) target = $region13
    $region12: #{tpu_custom_call.1} parent=1 // pred_region
      _
    $region13: #{tpu_custom_call.1} parent=1 // pred_fallthru
      _
    %v15 = vld [vmem:[%s1] sm:$0x3f]
    %v16 = vld [vmem:[%s2] sm:$0x3f]
    %v17 = vld [vmem:[%s0] sm:$0x3f]
    %v18 = vld [vmem:[%s0 + $0x8] sm:$0x3f]
    %20 = vset.pattern.permute.xlu0 0
    %21 = vperm.xlu0 %20, %v15
    %v22 = vpop.permute.xlu0 %21
    %v24 = vmul.f32 %v17, %v22
    %v25 = vmul.f32 %v18, %v22
    %27 = vset.pattern.permute.xlu0 0
    %28 = vperm.xlu0 %27, %v16
    %v29 = vpop.permute.xlu0 %28
    %v31 = vadd.f32 %v24, %v29
    %v32 = vadd.f32 %v25, %v29
    %33 = vst [vmem:[#allocation2] sm:$0x3f] %v31
    %34 = vst [vmem:[#allocation2 + $0x8] sm:$0x3f] %v32
    // Predicated region
    $region14: #{tpu_custom_call.1} parent=1 // pred_check
      _
    $region15: #{tpu_custom_call.1} parent=1 // pred_check_branch
      %36 = sbr.rel (0) target = $region17
    $region16: #{tpu_custom_call.1} parent=1 // pred_region
      %s38 = ssub.s32 256, 256
      %39 = vsyncadd [#allocation3], %s38
      %s41 = sshll.u32 [#allocation2], 4
      %s42 = int_to_ptr.vmem [resolvable:$true] %s41
      %44 = dma.vmem_to_hbm [thread:$0]  %s42, 256, %s3, [#allocation3]
    $region17: #{tpu_custom_call.1} parent=1 // pred_fallthru
      _
    // Predicated region
    $region18: #{tpu_custom_call.1} parent=1 // pred_check
      _
    $region19: #{tpu_custom_call.1} parent=1 // pred_check_branch
      %46 = sbr.rel (0) target = $region21
    $region20: #{tpu_custom_call.1} parent=1 // pred_region
      %47 = dma.done [#allocation3], 256
    $region21: #{tpu_custom_call.1} parent=1 // pred_fallthru
      _
    %48 = vsyncpa [#allocation3], 1

</llo_original>
